<compile_context>
chip_gen: v6e
topology: v6e:2x2x1
jax: 0.10.0
libtpu: 0.0.40
codegen_flags: <defaults>
</compile_context>

<pallas_src>
import functools
import math

import jax
import jax.numpy as jnp
from jax.experimental import pallas as pl
from jax.experimental.pallas import tpu as pltpu


# -----------------------------------------------------------------------------
# PE table construction (one-time init cost).  Kept as [max_len, d_model] fp32;
# it is never broadcast over batch.
# -----------------------------------------------------------------------------
def make_pe_table(d_model: int, max_len: int = 5000):
    position = jnp.arange(max_len, dtype=jnp.float32)[:, None]               # [max_len, 1]
    div_term = jnp.exp(
        jnp.arange(0, d_model, 2, dtype=jnp.float32) * (-math.log(10000.0) / d_model)
    )                                                                         # [ceil(d/2)]
    angles = position * div_term                                              # [max_len, ceil(d/2)]
    pe = jnp.zeros((max_len, d_model), dtype=jnp.float32)
    pe = pe.at[:, 0::2].set(jnp.sin(angles))
    pe = pe.at[:, 1::2].set(jnp.cos(angles)[:, : d_model // 2])
    return pe                                                                 # fp32 [max_len, d_model]


# -----------------------------------------------------------------------------
# Kernels.  x/o blocks are (tile_seq, batch*d_model) (lane-dense, seq on
# sublanes); the PE block is (tile_seq, d_model) fp32 and is reused for every
# batch column with static, lane-aligned slices (d_model is a 128 multiple on
# the Pallas path), so the PE read is ~1/batch of the old broadcast read.
# -----------------------------------------------------------------------------
def _add_pe_kernel(x_ref, pe_ref, o_ref, *, batch: int, d_model: int):
    pe = pe_ref[...]                                     # fp32 (tile_seq, d_model)
    for b in range(batch):                               # static unroll
        sl = slice(b * d_model, (b + 1) * d_model)       # lane-aligned static slice
        o_ref[:, sl] = (x_ref[:, sl].astype(jnp.float32) + pe).astype(o_ref.dtype)


def _add_pe_dropout_kernel(seed_ref, x_ref, pe_ref, o_ref, *,
                           batch: int, d_model: int, rate: float):
    # Dropout folded into the kernel (free under the DMA bound).  Only traced
    # when rate > 0; the module default (p=0) uses _add_pe_kernel.
    keep_prob = 1.0 - rate
    pltpu.prng_seed(seed_ref[0] + pl.program_id(0))      # decorrelate seq tiles
    pe = pe_ref[...]
    drop_thresh = jnp.uint32(min(int(rate * 4294967296.0), 4294967295))
    inv_keep = jnp.float32(1.0 / keep_prob)
    for b in range(batch):
        sl = slice(b * d_model, (b + 1) * d_model)
        y = x_ref[:, sl].astype(jnp.float32) + pe
        bits = pltpu.bitcast(pltpu.prng_random_bits(y.shape), jnp.uint32)
        y = jnp.where(bits >= drop_thresh, y * inv_keep, 0.0)
        o_ref[:, sl] = y.astype(o_ref.dtype)


# -----------------------------------------------------------------------------
# Wrapper
# -----------------------------------------------------------------------------
def _round_up(x: int, m: int) -> int:
    return ((x + m - 1) // m) * m


def _sublane(dtype) -> int:
    # packed sublane count: 8 for 4-byte, 16 for 2-byte, 32 for 1-byte dtypes
    return max(8, 32 // jnp.dtype(dtype).itemsize)


def _vmem_capacity_bytes() -> int:
    try:
        return int(pltpu.get_tpu_info().vmem_capacity_bytes)
    except Exception:
        return 64 << 20          # assume the smallest (v7x) if the query fails


def positional_encoding_forward(
    x,                              # [seq_len, batch, d_model]
    pe,                             # [max_len, d_model] fp32 sinusoidal table
    *,
    dropout_rate: float = 0.0,      # module default p=0 -> identity
    dropout_seed: int = 0,
    tile_seq: int | None = None,
    target_block_bytes: int | None = None,
    min_pallas_bytes: int = 256 << 10,
    donate_x: bool = False,         # alias x -> out (only when the caller no longer needs x)
):
    seq_len, batch, d_model = x.shape
    assert pe.shape[0] >= seq_len, "pe table shorter than sequence"
    assert pe.shape[1] == d_model, "pe table built for a different d_model"
    pe = pe.astype(jnp.float32)

    itemsize = jnp.dtype(x.dtype).itemsize
    sub = _sublane(x.dtype)
    bd = batch * d_model

    use_pallas = (
        d_model % 128 == 0                      # lane-aligned per-batch slices
        and seq_len >= sub
        and x.size * itemsize >= min_pallas_bytes
    )
    if not use_pallas:
        # Tiny problems / unaligned d_model: XLA's fused add already runs at the
        # HBM roofline.
        # TODO(synk): d_model not a multiple of 128 (e.g. in_feature=840 in the
        # encoder PE) would need padded lanes or unaligned slices; left to XLA.
        y = (x.astype(jnp.float32) + pe[:seq_len][:, None, :]).astype(x.dtype)
        if dropout_rate > 0.0:
            keep = jax.random.bernoulli(jax.random.PRNGKey(dropout_seed),
                                        1.0 - dropout_rate, y.shape)
            y = jnp.where(keep, y / (1.0 - dropout_rate), 0).astype(x.dtype)
        return y

    # ------------------------------------------------------------------ tiling
    vmem_cap = _vmem_capacity_bytes()
    if target_block_bytes is None:
        # bigger blocks amortize per-grid-step overhead; keep v7x (64 MiB VMEM) safe
        target_block_bytes = (8 << 20) if vmem_cap >= (96 << 20) else (4 << 20)

    row_bytes = bd * itemsize            # one seq row of x (== one row of out)
    pe_row_bytes = d_model * 4           # fp32 pe row
    per_row_cost = 4 * row_bytes + 2 * pe_row_bytes   # x,out double-buffered + pe double-buffered
    slack = 4 << 20
    vmem_budget = max(16 << 20, min(48 << 20, vmem_cap - (16 << 20)))

    if tile_seq is None:
        tile_seq = min(target_block_bytes // max(row_bytes, 1),
                       (vmem_budget - slack) // per_row_cost)
        tile_seq = max(sub, tile_seq - tile_seq % sub)
    tile_seq = int(min(tile_seq, _round_up(seq_len, sub)))
    tile_seq = max(sub, tile_seq - tile_seq % sub)

    grid = (pl.cdiv(seq_len, tile_seq),)
    vmem_limit = int(min(max(tile_seq * per_row_cost + slack, 16 << 20), 48 << 20))

    # ------------------------------------------------------------------ specs
    x2d = x.reshape(seq_len, bd)                         # free, contiguous view
    x_spec = pl.BlockSpec((tile_seq, bd), lambda s, *_: (s, 0))
    pe_spec = pl.BlockSpec((tile_seq, d_model), lambda s, *_: (s, 0))
    out_spec = pl.BlockSpec((tile_seq, bd), lambda s, *_: (s, 0))
    out_shape = jax.ShapeDtypeStruct((seq_len, bd), x.dtype)
    compiler_params = pltpu.CompilerParams(
        dimension_semantics=("parallel",),
        vmem_limit_bytes=vmem_limit,
    )

    if dropout_rate == 0.0:
        kernel = functools.partial(_add_pe_kernel, batch=batch, d_model=d_model)
        out2d = pl.pallas_call(
            kernel,
            out_shape=out_shape,
            grid_spec=pltpu.PrefetchScalarGridSpec(
                num_scalar_prefetch=0,
                grid=grid,
                in_specs=[x_spec, pe_spec],
                out_specs=out_spec,
            ),
            compiler_params=compiler_params,
            input_output_aliases=({0: 0} if donate_x else {}),
        )(x2d, pe)
    else:
        kernel = functools.partial(_add_pe_dropout_kernel, batch=batch,
                                   d_model=d_model, rate=float(dropout_rate))
        seed_arr = jnp.asarray([dropout_seed], dtype=jnp.int32)
        out2d = pl.pallas_call(
            kernel,
            out_shape=out_shape,
            grid_spec=pltpu.PrefetchScalarGridSpec(
                num_scalar_prefetch=1,               # seed lives in SMEM
                grid=grid,
                in_specs=[x_spec, pe_spec],
                out_specs=out_spec,
            ),
            compiler_params=compiler_params,
        )(seed_arr, x2d, pe)

    return out2d.reshape(seq_len, batch, d_model)


# -----------------------------------------------------------------------------
# Demo / correctness check
# -----------------------------------------------------------------------------
if __name__ == "__main__":
    key = jax.random.PRNGKey(0)
    k1, k2 = jax.random.split(key)
    max_len = 5000

    # --- Pallas path: module-consistent shape (latent_codex_size=512), batch=2 ---
    seq_len, batch, d_model = 128, 2, 512
    x = jax.random.normal(k1, (seq_len, batch, d_model), dtype=jnp.float32)
    pe = make_pe_table(d_model, max_len=max_len)               # [max_len, 512] fp32

    out = jax.block_until_ready(positional_encoding_forward(x, pe))
    ref = x + pe[:seq_len][:, None, :]
    assert out.shape == (seq_len, batch, d_model)
    assert jnp.allclose(out, ref, atol=1e-6), "mismatch vs reference (pallas path)"

    # --- tiny-shape fallback path (XLA fused add) ---
    ts, tb, td = 8, 2, 32
    xt = jax.random.normal(k2, (ts, tb, td), dtype=jnp.float32)
    pet = make_pe_table(td, max_len=max_len)
    out_t = jax.block_until_ready(positional_encoding_forward(xt, pet))
    ref_t = xt + pet[:ts][:, None, :]
    assert jnp.allclose(out_t, ref_t, atol=1e-6), "mismatch vs reference (fallback path)"

    print("KERNEL_OK")
</pallas_src>

<mosaic_0001>
module attributes {stable_mosaic.version = 11 : i64} {
  func.func @_add_pe_kernel(%arg0: i32, %arg1: memref<128x1024xf32, #tpu.memory_space<vmem>>, %arg2: memref<128x512xf32, #tpu.memory_space<vmem>>, %arg3: memref<128x1024xf32, #tpu.memory_space<vmem>>) attributes {dimension_semantics = [#tpu.dimension_semantics<parallel>], iteration_bounds = array<i64: 1>, scalar_prefetch = 0 : i64, scratch_operands = 0 : i64, tpu.core_type = #tpu.core_type<tc>, window_params = [{transform_indices = @transform_0, window_bounds = array<i64: 128, 1024>}, {transform_indices = @transform_1, window_bounds = array<i64: 128, 512>}, {transform_indices = @transform_2, window_bounds = array<i64: 128, 1024>}]} {
    %c0 = arith.constant 0 : index
    %c0_0 = arith.constant 0 : index
    %0 = vector.load %arg2[%c0, %c0_0] : memref<128x512xf32, #tpu.memory_space<vmem>>, vector<128x512xf32>
    %c0_1 = arith.constant 0 : index
    %c0_2 = arith.constant 0 : index
    %1 = vector.load %arg1[%c0_1, %c0_2] : memref<128x1024xf32, #tpu.memory_space<vmem>>, vector<128x512xf32>
    %2 = arith.addf %1, %0 : vector<128x512xf32>
    %c0_3 = arith.constant 0 : index
    %c0_4 = arith.constant 0 : index
    %3 = vector.load %arg3[%c0_3, %c0_4] : memref<128x1024xf32, #tpu.memory_space<vmem>>, vector<128x512xf32>
    tpu.vector_store %arg3[%c0_3, %c0_4], %2 {strides = array<i32>} : memref<128x1024xf32, #tpu.memory_space<vmem>>, vector<128x512xf32>,
    %c0_5 = arith.constant 0 : index
    %c512 = arith.constant 512 : index
    %4 = vector.load %arg1[%c0_5, %c512] : memref<128x1024xf32, #tpu.memory_space<vmem>>, vector<128x512xf32>
    %5 = arith.addf %4, %0 : vector<128x512xf32>
    %c0_6 = arith.constant 0 : index
    %c512_7 = arith.constant 512 : index
    %6 = vector.load %arg3[%c0_6, %c512_7] : memref<128x1024xf32, #tpu.memory_space<vmem>>, vector<128x512xf32>
    tpu.vector_store %arg3[%c0_6, %c512_7], %5 {strides = array<i32>} : memref<128x1024xf32, #tpu.memory_space<vmem>>, vector<128x512xf32>,
    return
  }
  func.func @transform_0(%arg0: i32) -> (i32, i32) {
    %c0_i32 = arith.constant 0 : i32
    %c0_i32_0 = arith.constant 0 : i32
    return %arg0, %c0_i32 : i32, i32
  }
  func.func @transform_1(%arg0: i32) -> (i32, i32) {
    %c0_i32 = arith.constant 0 : i32
    %c0_i32_0 = arith.constant 0 : i32
    return %arg0, %c0_i32 : i32, i32
  }
  func.func @transform_2(%arg0: i32) -> (i32, i32) {
    %c0_i32 = arith.constant 0 : i32
    %c0_i32_0 = arith.constant 0 : i32
    return %arg0, %c0_i32 : i32, i32
  }
}

</mosaic_0001>

<llo_original>
// kernel: tpu_custom_call.1
$region0: #{tpu_custom_call.1}
  #allocation0 [shape = 'u32[]', space=smem, size = 0x4, offset = 0x4, fixed_abs, tag = 'smem constant byte address 0x4 - core index']
  #allocation1 [shape = 'u32[144,128]{1,0:T(1,128)}', space=vmem, size = 0x12000, scoped, tag = 'internal scratch']
  %s0 = inlined_call_operand.hbm [shape: f32[128,1024], index: 0, kind: input, shape index: {}]
  %s1 = inlined_call_operand.hbm [shape: f32[5000,512], index: 1, kind: input, shape index: {}]
  %s2 = inlined_call_operand.hbm [shape: f32[128,1024], index: 2, kind: output, shape index: {}]
  %s3 = sld [smem:[#allocation0]]
  $region26: #{tpu_custom_call.1} parent=0
    _
  %s5 = ssub.s32 1, %s3
  %s6 = scalar_select 0, %s5, %s3
  $region1: #{tpu_custom_call.1} parent=0
    #allocation2 [shape = 'u8[524288]{0}', space=vmem, size = 0x80000, scoped, tag = 'input window, operand 0, single buffered']
    #allocation3 [shape = 's32[1]{0}', space=sflag, size = 0x4, scoped, tag = 'scoped memory for tpu_custom_call.1']
    #allocation4 [shape = 's32[1]{0}', space=sflag, size = 0x4, scoped, tag = 'scoped memory for tpu_custom_call.1']
    #allocation5 [shape = 'u8[262144]{0}', space=vmem, size = 0x40000, scoped, tag = 'input window, operand 1, single buffered']
    #allocation6 [shape = 's32[1]{0}', space=sflag, size = 0x4, scoped, tag = 'scoped memory for tpu_custom_call.1']
    #allocation7 [shape = 'u8[524288]{0}', space=vmem, size = 0x80000, scoped, tag = 'output window, operand 0, single buffered']
    %7 = vsyncpa [#allocation3], 0
    %8 = vsyncpa [#allocation6], 0
    %9 = vsyncpa [#allocation4], 0
    // Predicated region
    $region2: #{tpu_custom_call.1} parent=1 // pred_check
      _
    $region3: #{tpu_custom_call.1} parent=1 // pred_check_branch
      %11 = sbr.rel (0) target = $region5
    $region4: #{tpu_custom_call.1} parent=1 // pred_region
      %s13 = ssub.s32 16384, 16384
      %14 = vsyncadd [#allocation3], %s13
      %s15 = sshll.u32 [#allocation2], 4
      %s16 = int_to_ptr.vmem [resolvable:$true] %s15
      %21 = dma.hbm_to_vmem [thread:$0]  %s0, 16384, %s16, [#allocation3], 1024, 1024, 64
    $region5: #{tpu_custom_call.1} parent=1 // pred_fallthru
      _
    // Predicated region
    $region6: #{tpu_custom_call.1} parent=1 // pred_check
      _
    $region7: #{tpu_custom_call.1} parent=1 // pred_check_branch
      %23 = sbr.rel (0) target = $region9
    $region8: #{tpu_custom_call.1} parent=1 // pred_region
      %s25 = ssub.s32 8192, 8192
      %26 = vsyncadd [#allocation6], %s25
      %s27 = sshll.u32 [#allocation5], 4
      %s28 = int_to_ptr.vmem [resolvable:$true] %s27
      %33 = dma.hbm_to_vmem [thread:$0]  %s1, 8192, %s28, [#allocation6], 512, 512, 32
    $region9: #{tpu_custom_call.1} parent=1 // pred_fallthru
      _
    // Predicated region
    $region10: #{tpu_custom_call.1} parent=1 // pred_check
      _
    $region11: #{tpu_custom_call.1} parent=1 // pred_check_branch
      %35 = sbr.rel (0) target = $region13
    $region12: #{tpu_custom_call.1} parent=1 // pred_region
      %36 = dma.done [#allocation3], 16384
    $region13: #{tpu_custom_call.1} parent=1 // pred_fallthru
      _
    // Predicated region
    $region14: #{tpu_custom_call.1} parent=1 // pred_check
      _
    $region15: #{tpu_custom_call.1} parent=1 // pred_check_branch
      %38 = sbr.rel (0) target = $region17
    $region16: #{tpu_custom_call.1} parent=1 // pred_region
      %39 = dma.done [#allocation6], 8192
    $region17: #{tpu_custom_call.1} parent=1 // pred_fallthru
      _
    %v40 = vld [vmem:[#allocation5] sm:$0xff]
    %v41 = vld [vmem:[#allocation5 + $0x8] sm:$0xff]
    %v42 = vld [vmem:[#allocation5 + $0x10] sm:$0xff]
    %v43 = vld [vmem:[#allocation5 + $0x18] sm:$0xff]
    %v44 = vld [vmem:[#allocation5 + $0x20] sm:$0xff]
    %v45 = vld [vmem:[#allocation5 + $0x28] sm:$0xff]
    %v46 = vld [vmem:[#allocation5 + $0x30] sm:$0xff]
    %v47 = vld [vmem:[#allocation5 + $0x38] sm:$0xff]
    %v48 = vld [vmem:[#allocation5 + $0x40] sm:$0xff]
    %v49 = vld [vmem:[#allocation5 + $0x48] sm:$0xff]
    %v50 = vld [vmem:[#allocation5 + $0x50] sm:$0xff]
    %v51 = vld [vmem:[#allocation5 + $0x58] sm:$0xff]
    %v52 = vld [vmem:[#allocation5 + $0x60] sm:$0xff]
    %v53 = vld [vmem:[#allocation5 + $0x68] sm:$0xff]
    %v54 = vld [vmem:[#allocation5 + $0x70] sm:$0xff]
    %v55 = vld [vmem:[#allocation5 + $0x78] sm:$0xff]
    %v56 = vld [vmem:[#allocation5 + $0x80] sm:$0xff]
    %v57 = vld [vmem:[#allocation5 + $0x88] sm:$0xff]
    %v58 = vld [vmem:[#allocation5 + $0x90] sm:$0xff]
    %v59 = vld [vmem:[#allocation5 + $0x98] sm:$0xff]
    %v60 = vld [vmem:[#allocation5 + $0xa0] sm:$0xff]
    %v61 = vld [vmem:[#allocation5 + $0xa8] sm:$0xff]
    %v62 = vld [vmem:[#allocation5 + $0xb0] sm:$0xff]
    %v63 = vld [vmem:[#allocation5 + $0xb8] sm:$0xff]
    %v64 = vld [vmem:[#allocation5 + $0xc0] sm:$0xff]
    %v65 = vld [vmem:[#allocation5 + $0xc8] sm:$0xff]
    %v66 = vld [vmem:[#allocation5 + $0xd0] sm:$0xff]
    %v67 = vld [vmem:[#allocation5 + $0xd8] sm:$0xff]
    %v68 = vld [vmem:[#allocation5 + $0xe0] sm:$0xff]
    %v69 = vld [vmem:[#allocation5 + $0xe8] sm:$0xff]
    %v70 = vld [vmem:[#allocation5 + $0xf0] sm:$0xff]
    %v71 = vld [vmem:[#allocation5 + $0xf8] sm:$0xff]
    %v72 = vld [vmem:[#allocation5 + $0x100] sm:$0xff]
    %v73 = vld [vmem:[#allocation5 + $0x108] sm:$0xff]
    %v74 = vld [vmem:[#allocation5 + $0x110] sm:$0xff]
    %v75 = vld [vmem:[#allocation5 + $0x118] sm:$0xff]
    %v76 = vld [vmem:[#allocation5 + $0x120] sm:$0xff]
    %v77 = vld [vmem:[#allocation5 + $0x128] sm:$0xff]
    %v78 = vld [vmem:[#allocation5 + $0x130] sm:$0xff]
    %v79 = vld [vmem:[#allocation5 + $0x138] sm:$0xff]
    %v80 = vld [vmem:[#allocation5 + $0x140] sm:$0xff]
    %v81 = vld [vmem:[#allocation5 + $0x148] sm:$0xff]
    %v82 = vld [vmem:[#allocation5 + $0x150] sm:$0xff]
    %v83 = vld [vmem:[#allocation5 + $0x158] sm:$0xff]
    %v84 = vld [vmem:[#allocation5 + $0x160] sm:$0xff]
    %v85 = vld [vmem:[#allocation5 + $0x168] sm:$0xff]
    %v86 = vld [vmem:[#allocation5 + $0x170] sm:$0xff]
    %v87 = vld [vmem:[#allocation5 + $0x178] sm:$0xff]
    %v88 = vld [vmem:[#allocation5 + $0x180] sm:$0xff]
    %v89 = vld [vmem:[#allocation5 + $0x188] sm:$0xff]
    %v90 = vld [vmem:[#allocation5 + $0x190] sm:$0xff]
    %v91 = vld [vmem:[#allocation5 + $0x198] sm:$0xff]
    %v92 = vld [vmem:[#allocation5 + $0x1a0] sm:$0xff]
    %v93 = vld [vmem:[#allocation5 + $0x1a8] sm:$0xff]
    %v94 = vld [vmem:[#allocation5 + $0x1b0] sm:$0xff]
    %v95 = vld [vmem:[#allocation5 + $0x1b8] sm:$0xff]
    %v96 = vld [vmem:[#allocation5 + $0x1c0] sm:$0xff]
    %v97 = vld [vmem:[#allocation5 + $0x1c8] sm:$0xff]
    %v98 = vld [vmem:[#allocation5 + $0x1d0] sm:$0xff]
    %v99 = vld [vmem:[#allocation5 + $0x1d8] sm:$0xff]
    %v100 = vld [vmem:[#allocation5 + $0x1e0] sm:$0xff]
    %v101 = vld [vmem:[#allocation5 + $0x1e8] sm:$0xff]
    %v102 = vld [vmem:[#allocation5 + $0x1f0] sm:$0xff]
    %v103 = vld [vmem:[#allocation5 + $0x1f8] sm:$0xff]
    %v104 = vld [vmem:[#allocation2] sm:$0xff]
    %v105 = vld [vmem:[#allocation2 + $0x8] sm:$0xff]
    %v106 = vld [vmem:[#allocation2 + $0x10] sm:$0xff]
    %v107 = vld [vmem:[#allocation2 + $0x18] sm:$0xff]
    %v108 = vld [vmem:[#allocation2 + $0x40] sm:$0xff]
    %v109 = vld [vmem:[#allocation2 + $0x48] sm:$0xff]
    %v110 = vld [vmem:[#allocation2 + $0x50] sm:$0xff]
    %v111 = vld [vmem:[#allocation2 + $0x58] sm:$0xff]
    %v112 = vld [vmem:[#allocation2 + $0x80] sm:$0xff]
    %v113 = vld [vmem:[#allocation2 + $0x88] sm:$0xff]
    %v114 = vld [vmem:[#allocation2 + $0x90] sm:$0xff]
    %v115 = vld [vmem:[#allocation2 + $0x98] sm:$0xff]
    %v116 = vld [vmem:[#allocation2 + $0xc0] sm:$0xff]
    %v117 = vld [vmem:[#allocation2 + $0xc8] sm:$0xff]
    %v118 = vld [vmem:[#allocation2 + $0xd0] sm:$0xff]
    %v119 = vld [vmem:[#allocation2 + $0xd8] sm:$0xff]
    %v120 = vld [vmem:[#allocation2 + $0x100] sm:$0xff]
    %v121 = vld [vmem:[#allocation2 + $0x108] sm:$0xff]
    %v122 = vld [vmem:[#allocation2 + $0x110] sm:$0xff]
    %v123 = vld [vmem:[#allocation2 + $0x118] sm:$0xff]
    %v124 = vld [vmem:[#allocation2 + $0x140] sm:$0xff]
    %v125 = vld [vmem:[#allocation2 + $0x148] sm:$0xff]
    %v126 = vld [vmem:[#allocation2 + $0x150] sm:$0xff]
    %v127 = vld [vmem:[#allocation2 + $0x158] sm:$0xff]
    %v128 = vld [vmem:[#allocation2 + $0x180] sm:$0xff]
    %v129 = vld [vmem:[#allocation2 + $0x188] sm:$0xff]
    %v130 = vld [vmem:[#allocation2 + $0x190] sm:$0xff]
    %v131 = vld [vmem:[#allocation2 + $0x198] sm:$0xff]
    %v132 = vld [vmem:[#allocation2 + $0x1c0] sm:$0xff]
    %v133 = vld [vmem:[#allocation2 + $0x1c8] sm:$0xff]
    %v134 = vld [vmem:[#allocation2 + $0x1d0] sm:$0xff]
    %v135 = vld [vmem:[#allocation2 + $0x1d8] sm:$0xff]
    %v136 = vld [vmem:[#allocation2 + $0x200] sm:$0xff]
    %v137 = vld [vmem:[#allocation2 + $0x208] sm:$0xff]
    %v138 = vld [vmem:[#allocation2 + $0x210] sm:$0xff]
    %v139 = vld [vmem:[#allocation2 + $0x218] sm:$0xff]
    %v140 = vld [vmem:[#allocation2 + $0x240] sm:$0xff]
    %v141 = vld [vmem:[#allocation2 + $0x248] sm:$0xff]
    %v142 = vld [vmem:[#allocation2 + $0x250] sm:$0xff]
    %v143 = vld [vmem:[#allocation2 + $0x258] sm:$0xff]
    %v144 = vld [vmem:[#allocation2 + $0x280] sm:$0xff]
    %v145 = vld [vmem:[#allocation2 + $0x288] sm:$0xff]
    %v146 = vld [vmem:[#allocation2 + $0x290] sm:$0xff]
    %v147 = vld [vmem:[#allocation2 + $0x298] sm:$0xff]
    %v148 = vld [vmem:[#allocation2 + $0x2c0] sm:$0xff]
    %v149 = vld [vmem:[#allocation2 + $0x2c8] sm:$0xff]
    %v150 = vld [vmem:[#allocation2 + $0x2d0] sm:$0xff]
    %v151 = vld [vmem:[#allocation2 + $0x2d8] sm:$0xff]
    %v152 = vld [vmem:[#allocation2 + $0x300] sm:$0xff]
    %v153 = vld [vmem:[#allocation2 + $0x308] sm:$0xff]
    %v154 = vld [vmem:[#allocation2 + $0x310] sm:$0xff]
    %v155 = vld [vmem:[#allocation2 + $0x318] sm:$0xff]
    %v156 = vld [vmem:[#allocation2 + $0x340] sm:$0xff]
    %v157 = vld [vmem:[#allocation2 + $0x348] sm:$0xff]
    %v158 = vld [vmem:[#allocation2 + $0x350] sm:$0xff]
    %v159 = vld [vmem:[#allocation2 + $0x358] sm:$0xff]
    %v160 = vld [vmem:[#allocation2 + $0x380] sm:$0xff]
    %v161 = vld [vmem:[#allocation2 + $0x388] sm:$0xff]
    %v162 = vld [vmem:[#allocation2 + $0x390] sm:$0xff]
    %v163 = vld [vmem:[#allocation2 + $0x398] sm:$0xff]
    %v164 = vld [vmem:[#allocation2 + $0x3c0] sm:$0xff]
    %v165 = vld [vmem:[#allocation2 + $0x3c8] sm:$0xff]
    %v166 = vld [vmem:[#allocation2 + $0x3d0] sm:$0xff]
    %v167 = vld [vmem:[#allocation2 + $0x3d8] sm:$0xff]
    %v168 = vadd.f32 %v104, %v40
    %v169 = vadd.f32 %v105, %v41
    %v170 = vadd.f32 %v106, %v42
    %v171 = vadd.f32 %v107, %v43
    %v172 = vadd.f32 %v108, %v44
    %v173 = vadd.f32 %v109, %v45
    %v174 = vadd.f32 %v110, %v46
    %v175 = vadd.f32 %v111, %v47
    %v176 = vadd.f32 %v112, %v48
    %v177 = vadd.f32 %v113, %v49
    %v178 = vadd.f32 %v114, %v50
    %v179 = vadd.f32 %v115, %v51
    %v180 = vadd.f32 %v116, %v52
    %v181 = vadd.f32 %v117, %v53
    %v182 = vadd.f32 %v118, %v54
    %v183 = vadd.f32 %v119, %v55
    %v184 = vadd.f32 %v120, %v56
    %v185 = vadd.f32 %v121, %v57
    %v186 = vadd.f32 %v122, %v58
    %v187 = vadd.f32 %v123, %v59
    %v188 = vadd.f32 %v124, %v60
    %v189 = vadd.f32 %v125, %v61
    %v190 = vadd.f32 %v126, %v62
    %v191 = vadd.f32 %v127, %v63
    %v192 = vadd.f32 %v128, %v64
    %v193 = vadd.f32 %v129, %v65
    %v194 = vadd.f32 %v130, %v66
    %v195 = vadd.f32 %v131, %v67
    %v196 = vadd.f32 %v132, %v68
    %v197 = vadd.f32 %v133, %v69
    %v198 = vadd.f32 %v134, %v70
    %v199 = vadd.f32 %v135, %v71
    %v200 = vadd.f32 %v136, %v72
    %v201 = vadd.f32 %v137, %v73
    %v202 = vadd.f32 %v138, %v74
    %v203 = vadd.f32 %v139, %v75
    %v204 = vadd.f32 %v140, %v76
    %v205 = vadd.f32 %v141, %v77
    %v206 = vadd.f32 %v142, %v78
    %v207 = vadd.f32 %v143, %v79
    %v208 = vadd.f32 %v144, %v80
    %v209 = vadd.f32 %v145, %v81
    %v210 = vadd.f32 %v146, %v82
    %v211 = vadd.f32 %v147, %v83
    %v212 = vadd.f32 %v148, %v84
    %v213 = vadd.f32 %v149, %v85
    %v214 = vadd.f32 %v150, %v86
    %v215 = vadd.f32 %v151, %v87
    %v216 = vadd.f32 %v152, %v88
    %v217 = vadd.f32 %v153, %v89
    %v218 = vadd.f32 %v154, %v90
    %v219 = vadd.f32 %v155, %v91
    %v220 = vadd.f32 %v156, %v92
    %v221 = vadd.f32 %v157, %v93
    %v222 = vadd.f32 %v158, %v94
    %v223 = vadd.f32 %v159, %v95
    %v224 = vadd.f32 %v160, %v96
    %v225 = vadd.f32 %v161, %v97
    %v226 = vadd.f32 %v162, %v98
    %v227 = vadd.f32 %v163, %v99
    %v228 = vadd.f32 %v164, %v100
    %v229 = vadd.f32 %v165, %v101
    %v230 = vadd.f32 %v166, %v102
    %v231 = vadd.f32 %v167, %v103
    %232 = vst [vmem:[#allocation7] sm:$0xff] %v168
    %233 = vst [vmem:[#allocation7 + $0x8] sm:$0xff] %v169
    %234 = vst [vmem:[#allocation7 + $0x10] sm:$0xff] %v170
    %235 = vst [vmem:[#allocation7 + $0x18] sm:$0xff] %v171
    %236 = vst [vmem:[#allocation7 + $0x40] sm:$0xff] %v172
    %237 = vst [vmem:[#allocation7 + $0x48] sm:$0xff] %v173
    %238 = vst [vmem:[#allocation7 + $0x50] sm:$0xff] %v174
    %239 = vst [vmem:[#allocation7 + $0x58] sm:$0xff] %v175
    %240 = vst [vmem:[#allocation7 + $0x80] sm:$0xff] %v176
    %241 = vst [vmem:[#allocation7 + $0x88] sm:$0xff] %v177
    %242 = vst [vmem:[#allocation7 + $0x90] sm:$0xff] %v178
    %243 = vst [vmem:[#allocation7 + $0x98] sm:$0xff] %v179
    %244 = vst [vmem:[#allocation7 + $0xc0] sm:$0xff] %v180
    %245 = vst [vmem:[#allocation7 + $0xc8] sm:$0xff] %v181
    %246 = vst [vmem:[#allocation7 + $0xd0] sm:$0xff] %v182
    %247 = vst [vmem:[#allocation7 + $0xd8] sm:$0xff] %v183
    %248 = vst [vmem:[#allocation7 + $0x100] sm:$0xff] %v184
    %249 = vst [vmem:[#allocation7 + $0x108] sm:$0xff] %v185
    %250 = vst [vmem:[#allocation7 + $0x110] sm:$0xff] %v186
    %251 = vst [vmem:[#allocation7 + $0x118] sm:$0xff] %v187
    %252 = vst [vmem:[#allocation7 + $0x140] sm:$0xff] %v188
    %253 = vst [vmem:[#allocation7 + $0x148] sm:$0xff] %v189
    %254 = vst [vmem:[#allocation7 + $0x150] sm:$0xff] %v190
    %255 = vst [vmem:[#allocation7 + $0x158] sm:$0xff] %v191
    %256 = vst [vmem:[#allocation7 + $0x180] sm:$0xff] %v192
    %257 = vst [vmem:[#allocation7 + $0x188] sm:$0xff] %v193
    %258 = vst [vmem:[#allocation7 + $0x190] sm:$0xff] %v194
    %259 = vst [vmem:[#allocation7 + $0x198] sm:$0xff] %v195
    %260 = vst [vmem:[#allocation7 + $0x1c0] sm:$0xff] %v196
    %261 = vst [vmem:[#allocation7 + $0x1c8] sm:$0xff] %v197
    %262 = vst [vmem:[#allocation7 + $0x1d0] sm:$0xff] %v198
    %263 = vst [vmem:[#allocation7 + $0x1d8] sm:$0xff] %v199
    %264 = vst [vmem:[#allocation7 + $0x200] sm:$0xff] %v200
    %265 = vst [vmem:[#allocation7 + $0x208] sm:$0xff] %v201
    %266 = vst [vmem:[#allocation7 + $0x210] sm:$0xff] %v202
    %267 = vst [vmem:[#allocation7 + $0x218] sm:$0xff] %v203
    %268 = vst [vmem:[#allocation7 + $0x240] sm:$0xff] %v204
    %269 = vst [vmem:[#allocation7 + $0x248] sm:$0xff] %v205
    %270 = vst [vmem:[#allocation7 + $0x250] sm:$0xff] %v206
    %271 = vst [vmem:[#allocation7 + $0x258] sm:$0xff] %v207
    %272 = vst [vmem:[#allocation7 + $0x280] sm:$0xff] %v208
    %273 = vst [vmem:[#allocation7 + $0x288] sm:$0xff] %v209
    %274 = vst [vmem:[#allocation7 + $0x290] sm:$0xff] %v210
    %275 = vst [vmem:[#allocation7 + $0x298] sm:$0xff] %v211
    %276 = vst [vmem:[#allocation7 + $0x2c0] sm:$0xff] %v212
    %277 = vst [vmem:[#allocation7 + $0x2c8] sm:$0xff] %v213
    %278 = vst [vmem:[#allocation7 + $0x2d0] sm:$0xff] %v214
    %279 = vst [vmem:[#allocation7 + $0x2d8] sm:$0xff] %v215
    %280 = vst [vmem:[#allocation7 + $0x300] sm:$0xff] %v216
    %281 = vst [vmem:[#allocation7 + $0x308] sm:$0xff] %v217
    %282 = vst [vmem:[#allocation7 + $0x310] sm:$0xff] %v218
    %283 = vst [vmem:[#allocation7 + $0x318] sm:$0xff] %v219
    %284 = vst [vmem:[#allocation7 + $0x340] sm:$0xff] %v220
    %285 = vst [vmem:[#allocation7 + $0x348] sm:$0xff] %v221
    %286 = vst [vmem:[#allocation7 + $0x350] sm:$0xff] %v222
    %287 = vst [vmem:[#allocation7 + $0x358] sm:$0xff] %v223
    %288 = vst [vmem:[#allocation7 + $0x380] sm:$0xff] %v224
    %289 = vst [vmem:[#allocation7 + $0x388] sm:$0xff] %v225
    %290 = vst [vmem:[#allocation7 + $0x390] sm:$0xff] %v226
    %291 = vst [vmem:[#allocation7 + $0x398] sm:$0xff] %v227
    %292 = vst [vmem:[#allocation7 + $0x3c0] sm:$0xff] %v228
    %293 = vst [vmem:[#allocation7 + $0x3c8] sm:$0xff] %v229
    %294 = vst [vmem:[#allocation7 + $0x3d0] sm:$0xff] %v230
    %295 = vst [vmem:[#allocation7 + $0x3d8] sm:$0xff] %v231
    %v296 = vld [vmem:[#allocation2 + $0x20] sm:$0xff]
    %v297 = vld [vmem:[#allocation2 + $0x28] sm:$0xff]
    %v298 = vld [vmem:[#allocation2 + $0x30] sm:$0xff]
    %v299 = vld [vmem:[#allocation2 + $0x38] sm:$0xff]
    %v300 = vld [vmem:[#allocation2 + $0x60] sm:$0xff]
    %v301 = vld [vmem:[#allocation2 + $0x68] sm:$0xff]
    %v302 = vld [vmem:[#allocation2 + $0x70] sm:$0xff]
    %v303 = vld [vmem:[#allocation2 + $0x78] sm:$0xff]
    %v304 = vld [vmem:[#allocation2 + $0xa0] sm:$0xff]
    %v305 = vld [vmem:[#allocation2 + $0xa8] sm:$0xff]
    %v306 = vld [vmem:[#allocation2 + $0xb0] sm:$0xff]
    %v307 = vld [vmem:[#allocation2 + $0xb8] sm:$0xff]
    %v308 = vld [vmem:[#allocation2 + $0xe0] sm:$0xff]
    %v309 = vld [vmem:[#allocation2 + $0xe8] sm:$0xff]
    %v310 = vld [vmem:[#allocation2 + $0xf0] sm:$0xff]
    %v311 = vld [vmem:[#allocation2 + $0xf8] sm:$0xff]
    %v312 = vld [vmem:[#allocation2 + $0x120] sm:$0xff]
    %v313 = vld [vmem:[#allocation2 + $0x128] sm:$0xff]
    %v314 = vld [vmem:[#allocation2 + $0x130] sm:$0xff]
    %v315 = vld [vmem:[#allocation2 + $0x138] sm:$0xff]
    %v316 = vld [vmem:[#allocation2 + $0x160] sm:$0xff]
    %v317 = vld [vmem:[#allocation2 + $0x168] sm:$0xff]
    %v318 = vld [vmem:[#allocation2 + $0x170] sm:$0xff]
    %v319 = vld [vmem:[#allocation2 + $0x178] sm:$0xff]
    %v320 = vld [vmem:[#allocation2 + $0x1a0] sm:$0xff]
    %v321 = vld [vmem:[#allocation2 + $0x1a8] sm:$0xff]
    %v322 = vld [vmem:[#allocation2 + $0x1b0] sm:$0xff]
    %v323 = vld [vmem:[#allocation2 + $0x1b8] sm:$0xff]
    %v324 = vld [vmem:[#allocation2 + $0x1e0] sm:$0xff]
    %v325 = vld [vmem:[#allocation2 + $0x1e8] sm:$0xff]
    %v326 = vld [vmem:[#allocation2 + $0x1f0] sm:$0xff]
    %v327 = vld [vmem:[#allocation2 + $0x1f8] sm:$0xff]
    %v328 = vld [vmem:[#allocation2 + $0x220] sm:$0xff]
    %v329 = vld [vmem:[#allocation2 + $0x228] sm:$0xff]
    %v330 = vld [vmem:[#allocation2 + $0x230] sm:$0xff]
    %v331 = vld [vmem:[#allocation2 + $0x238] sm:$0xff]
    %v332 = vld [vmem:[#allocation2 + $0x260] sm:$0xff]
    %v333 = vld [vmem:[#allocation2 + $0x268] sm:$0xff]
    %v334 = vld [vmem:[#allocation2 + $0x270] sm:$0xff]
    %v335 = vld [vmem:[#allocation2 + $0x278] sm:$0xff]
    %v336 = vld [vmem:[#allocation2 + $0x2a0] sm:$0xff]
    %v337 = vld [vmem:[#allocation2 + $0x2a8] sm:$0xff]
    %v338 = vld [vmem:[#allocation2 + $0x2b0] sm:$0xff]
    %v339 = vld [vmem:[#allocation2 + $0x2b8] sm:$0xff]
    %v340 = vld [vmem:[#allocation2 + $0x2e0] sm:$0xff]
    %v341 = vld [vmem:[#allocation2 + $0x2e8] sm:$0xff]
    %v342 = vld [vmem:[#allocation2 + $0x2f0] sm:$0xff]
    %v343 = vld [vmem:[#allocation2 + $0x2f8] sm:$0xff]
    %v344 = vld [vmem:[#allocation2 + $0x320] sm:$0xff]
    %v345 = vld [vmem:[#allocation2 + $0x328] sm:$0xff]
    %v346 = vld [vmem:[#allocation2 + $0x330] sm:$0xff]
    %v347 = vld [vmem:[#allocation2 + $0x338] sm:$0xff]
    %v348 = vld [vmem:[#allocation2 + $0x360] sm:$0xff]
    %v349 = vld [vmem:[#allocation2 + $0x368] sm:$0xff]
    %v350 = vld [vmem:[#allocation2 + $0x370] sm:$0xff]
    %v351 = vld [vmem:[#allocation2 + $0x378] sm:$0xff]
    %v352 = vld [vmem:[#allocation2 + $0x3a0] sm:$0xff]
    %v353 = vld [vmem:[#allocation2 + $0x3a8] sm:$0xff]
    %v354 = vld [vmem:[#allocation2 + $0x3b0] sm:$0xff]
    %v355 = vld [vmem:[#allocation2 + $0x3b8] sm:$0xff]
    %v356 = vld [vmem:[#allocation2 + $0x3e0] sm:$0xff]
    %v357 = vld [vmem:[#allocation2 + $0x3e8] sm:$0xff]
    %v358 = vld [vmem:[#allocation2 + $0x3f0] sm:$0xff]
    %v359 = vld [vmem:[#allocation2 + $0x3f8] sm:$0xff]
    %v360 = vadd.f32 %v296, %v40
    %v361 = vadd.f32 %v297, %v41
    %v362 = vadd.f32 %v298, %v42
    %v363 = vadd.f32 %v299, %v43
    %v364 = vadd.f32 %v300, %v44
    %v365 = vadd.f32 %v301, %v45
    %v366 = vadd.f32 %v302, %v46
    %v367 = vadd.f32 %v303, %v47
    %v368 = vadd.f32 %v304, %v48
    %v369 = vadd.f32 %v305, %v49
    %v370 = vadd.f32 %v306, %v50
    %v371 = vadd.f32 %v307, %v51
    %v372 = vadd.f32 %v308, %v52
    %v373 = vadd.f32 %v309, %v53
    %v374 = vadd.f32 %v310, %v54
    %v375 = vadd.f32 %v311, %v55
    %v376 = vadd.f32 %v312, %v56
    %v377 = vadd.f32 %v313, %v57
    %v378 = vadd.f32 %v314, %v58
    %v379 = vadd.f32 %v315, %v59
    %v380 = vadd.f32 %v316, %v60
    %v381 = vadd.f32 %v317, %v61
    %v382 = vadd.f32 %v318, %v62
    %v383 = vadd.f32 %v319, %v63
    %v384 = vadd.f32 %v320, %v64
    %v385 = vadd.f32 %v321, %v65
    %v386 = vadd.f32 %v322, %v66
    %v387 = vadd.f32 %v323, %v67
    %v388 = vadd.f32 %v324, %v68
    %v389 = vadd.f32 %v325, %v69
    %v390 = vadd.f32 %v326, %v70
    %v391 = vadd.f32 %v327, %v71
    %v392 = vadd.f32 %v328, %v72
    %v393 = vadd.f32 %v329, %v73
    %v394 = vadd.f32 %v330, %v74
    %v395 = vadd.f32 %v331, %v75
    %v396 = vadd.f32 %v332, %v76
    %v397 = vadd.f32 %v333, %v77
    %v398 = vadd.f32 %v334, %v78
    %v399 = vadd.f32 %v335, %v79
    %v400 = vadd.f32 %v336, %v80
    %v401 = vadd.f32 %v337, %v81
    %v402 = vadd.f32 %v338, %v82
    %v403 = vadd.f32 %v339, %v83
    %v404 = vadd.f32 %v340, %v84
    %v405 = vadd.f32 %v341, %v85
    %v406 = vadd.f32 %v342, %v86
    %v407 = vadd.f32 %v343, %v87
    %v408 = vadd.f32 %v344, %v88
    %v409 = vadd.f32 %v345, %v89
    %v410 = vadd.f32 %v346, %v90
    %v411 = vadd.f32 %v347, %v91
    %v412 = vadd.f32 %v348, %v92
    %v413 = vadd.f32 %v349, %v93
    %v414 = vadd.f32 %v350, %v94
    %v415 = vadd.f32 %v351, %v95
    %v416 = vadd.f32 %v352, %v96
    %v417 = vadd.f32 %v353, %v97
    %v418 = vadd.f32 %v354, %v98
    %v419 = vadd.f32 %v355, %v99
    %v420 = vadd.f32 %v356, %v100
    %v421 = vadd.f32 %v357, %v101
    %v422 = vadd.f32 %v358, %v102
    %v423 = vadd.f32 %v359, %v103
    %424 = vst [vmem:[#allocation7 + $0x20] sm:$0xff] %v360
    %425 = vst [vmem:[#allocation7 + $0x28] sm:$0xff] %v361
    %426 = vst [vmem:[#allocation7 + $0x30] sm:$0xff] %v362
    %427 = vst [vmem:[#allocation7 + $0x38] sm:$0xff] %v363
    %428 = vst [vmem:[#allocation7 + $0x60] sm:$0xff] %v364
    %429 = vst [vmem:[#allocation7 + $0x68] sm:$0xff] %v365
    %430 = vst [vmem:[#allocation7 + $0x70] sm:$0xff] %v366
    %431 = vst [vmem:[#allocation7 + $0x78] sm:$0xff] %v367
    %432 = vst [vmem:[#allocation7 + $0xa0] sm:$0xff] %v368
    %433 = vst [vmem:[#allocation7 + $0xa8] sm:$0xff] %v369
    %434 = vst [vmem:[#allocation7 + $0xb0] sm:$0xff] %v370
    %435 = vst [vmem:[#allocation7 + $0xb8] sm:$0xff] %v371
    %436 = vst [vmem:[#allocation7 + $0xe0] sm:$0xff] %v372
    %437 = vst [vmem:[#allocation7 + $0xe8] sm:$0xff] %v373
    %438 = vst [vmem:[#allocation7 + $0xf0] sm:$0xff] %v374
    %439 = vst [vmem:[#allocation7 + $0xf8] sm:$0xff] %v375
    %440 = vst [vmem:[#allocation7 + $0x120] sm:$0xff] %v376
    %441 = vst [vmem:[#allocation7 + $0x128] sm:$0xff] %v377
    %442 = vst [vmem:[#allocation7 + $0x130] sm:$0xff] %v378
    %443 = vst [vmem:[#allocation7 + $0x138] sm:$0xff] %v379
    %444 = vst [vmem:[#allocation7 + $0x160] sm:$0xff] %v380
    %445 = vst [vmem:[#allocation7 + $0x168] sm:$0xff] %v381
    %446 = vst [vmem:[#allocation7 + $0x170] sm:$0xff] %v382
    %447 = vst [vmem:[#allocation7 + $0x178] sm:$0xff] %v383
    %448 = vst [vmem:[#allocation7 + $0x1a0] sm:$0xff] %v384
    %449 = vst [vmem:[#allocation7 + $0x1a8] sm:$0xff] %v385
    %450 = vst [vmem:[#allocation7 + $0x1b0] sm:$0xff] %v386
    %451 = vst [vmem:[#allocation7 + $0x1b8] sm:$0xff] %v387
    %452 = vst [vmem:[#allocation7 + $0x1e0] sm:$0xff] %v388
    %453 = vst [vmem:[#allocation7 + $0x1e8] sm:$0xff] %v389
    %454 = vst [vmem:[#allocation7 + $0x1f0] sm:$0xff] %v390
    %455 = vst [vmem:[#allocation7 + $0x1f8] sm:$0xff] %v391
    %456 = vst [vmem:[#allocation7 + $0x220] sm:$0xff] %v392
    %457 = vst [vmem:[#allocation7 + $0x228] sm:$0xff] %v393
    %458 = vst [vmem:[#allocation7 + $0x230] sm:$0xff] %v394
    %459 = vst [vmem:[#allocation7 + $0x238] sm:$0xff] %v395
    %460 = vst [vmem:[#allocation7 + $0x260] sm:$0xff] %v396
    %461 = vst [vmem:[#allocation7 + $0x268] sm:$0xff] %v397
    %462 = vst [vmem:[#allocation7 + $0x270] sm:$0xff] %v398
    %463 = vst [vmem:[#allocation7 + $0x278] sm:$0xff] %v399
    %464 = vst [vmem:[#allocation7 + $0x2a0] sm:$0xff] %v400
    %465 = vst [vmem:[#allocation7 + $0x2a8] sm:$0xff] %v401
    %466 = vst [vmem:[#allocation7 + $0x2b0] sm:$0xff] %v402
    %467 = vst [vmem:[#allocation7 + $0x2b8] sm:$0xff] %v403
    %468 = vst [vmem:[#allocation7 + $0x2e0] sm:$0xff] %v404
    %469 = vst [vmem:[#allocation7 + $0x2e8] sm:$0xff] %v405
    %470 = vst [vmem:[#allocation7 + $0x2f0] sm:$0xff] %v406
    %471 = vst [vmem:[#allocation7 + $0x2f8] sm:$0xff] %v407
    %472 = vst [vmem:[#allocation7 + $0x320] sm:$0xff] %v408
    %473 = vst [vmem:[#allocation7 + $0x328] sm:$0xff] %v409
    %474 = vst [vmem:[#allocation7 + $0x330] sm:$0xff] %v410
    %475 = vst [vmem:[#allocation7 + $0x338] sm:$0xff] %v411
    %476 = vst [vmem:[#allocation7 + $0x360] sm:$0xff] %v412
    %477 = vst [vmem:[#allocation7 + $0x368] sm:$0xff] %v413
    %478 = vst [vmem:[#allocation7 + $0x370] sm:$0xff] %v414
    %479 = vst [vmem:[#allocation7 + $0x378] sm:$0xff] %v415
    %480 = vst [vmem:[#allocation7 + $0x3a0] sm:$0xff] %v416
    %481 = vst [vmem:[#allocation7 + $0x3a8] sm:$0xff] %v417
    %482 = vst [vmem:[#allocation7 + $0x3b0] sm:$0xff] %v418
    %483 = vst [vmem:[#allocation7 + $0x3b8] sm:$0xff] %v419
    %484 = vst [vmem:[#allocation7 + $0x3e0] sm:$0xff] %v420
    %485 = vst [vmem:[#allocation7 + $0x3e8] sm:$0xff] %v421
    %486 = vst [vmem:[#allocation7 + $0x3f0] sm:$0xff] %v422
    %487 = vst [vmem:[#allocation7 + $0x3f8] sm:$0xff] %v423
    // Predicated region
    $region18: #{tpu_custom_call.1} parent=1 // pred_check
      _
    $region19: #{tpu_custom_call.1} parent=1 // pred_check_branch
      %489 = sbr.rel (0) target = $region21
    $region20: #{tpu_custom_call.1} parent=1 // pred_region
      %s491 = ssub.s32 16384, 16384
      %492 = vsyncadd [#allocation4], %s491
      %s493 = sshll.u32 [#allocation7], 4
      %s494 = int_to_ptr.vmem [resolvable:$true] %s493
      %499 = dma.vmem_to_hbm [thread:$0]  %s494, 16384, %s2, [#allocation4], 1024, 1024, 64
    $region21: #{tpu_custom_call.1} parent=1 // pred_fallthru
      _
    // Predicated region
    $region22: #{tpu_custom_call.1} parent=1 // pred_check
      _
    $region23: #{tpu_custom_call.1} parent=1 // pred_check_branch
      %501 = sbr.rel (0) target = $region25
    $region24: #{tpu_custom_call.1} parent=1 // pred_region
      %502 = dma.done [#allocation4], 16384
    $region25: #{tpu_custom_call.1} parent=1 // pred_fallthru
      _
    %503 = vsyncpa [#allocation3], 1
    %504 = vsyncpa [#allocation6], 1
    %505 = vsyncpa [#allocation4], 1

</llo_original>
